<compile_context>
chip_gen: v5e
topology: v5e:2x2
jax: 0.10.0
libtpu: 0.0.40
codegen_flags: <defaults>
</compile_context>

<pallas_src>
import functools
import math

import jax
import jax.numpy as jnp
from jax.experimental import pallas as pl
from jax.experimental.pallas import tpu as pltpu


# ~2 MiB per input tile: reaches the HBM roofline while keeping the
# double-buffered in/out tiles plus f32 temporaries far below v7x's 64 MiB
# VMEM (and trivially below v5e/v6e's 128 MiB).  No artificial row cap and no
# min-grid-steps shrink: on 1-TC v5e/v6e extra steps only add ~0.35 us each,
# and on v7x any input big enough to benefit from 2 TCs already yields a long
# grid at this tile size.
_TARGET_TILE_BYTES = 2 * 1024 * 1024
_LANES = 128


def _sublane_multiple(dtype) -> int:
    itemsize = jnp.dtype(dtype).itemsize
    return {1: 32, 2: 16}.get(itemsize, 8)


def _pick_block_rows(rows: int, dim: int, dtype) -> int:
    """Largest sublane-aligned row tile near the ~2 MiB input-tile target."""
    itemsize = jnp.dtype(dtype).itemsize
    sublane = _sublane_multiple(dtype)
    per_row_bytes = dim * itemsize
    budget_rows = max(sublane, _TARGET_TILE_BYTES // per_row_bytes)
    block_rows = max(sublane, (int(budget_rows) // sublane) * sublane)
    if block_rows >= rows:
        return rows  # a single full-extent block is always a legal block shape
    return block_rows


def _rmsnorm_kernel(x_ref, scale_ref, o_ref, *, eps, inv_dim):
    # x_ref: (block_rows, dim); scale_ref: (1, dim) f32, resident (constant
    # index_map, pre-cast in the wrapper -- no per-tile astype, no broadcast
    # materialization).
    x = x_ref[...].astype(jnp.float32)
    ms = jnp.sum(x * x, axis=-1, keepdims=True) * inv_dim   # XLU reduction
    inv = jax.lax.rsqrt(ms + eps)                            # EUP rsqrt
    o_ref[...] = (x * inv * scale_ref[...]).astype(o_ref.dtype)


def _rmsnorm_folded_kernel(x_ref, scale_ref, seg_ref, o_ref, *, eps, inv_dim):
    # Lane-folded path for dim < 128: x_ref is (block_rows, k*dim) with k rows
    # packed into the 128-lane axis.  Segmented sum-of-squares via a resident
    # (k*dim, k*dim) block-diagonal 0/1 matrix on the MXU keeps every load,
    # store and elementwise op lane-dense (unmasked vst).
    x = x_ref[...].astype(jnp.float32)
    ss = jnp.dot(x * x, seg_ref[...], preferred_element_type=jnp.float32)
    inv = jax.lax.rsqrt(ss * inv_dim + eps)
    o_ref[...] = (x * inv * scale_ref[...]).astype(o_ref.dtype)


def rmsnorm(x, scale, *, eps=1e-6, block_rows=None):
    """RMSNorm over the last axis. x: [..., dim], scale: [dim]."""
    orig_shape = x.shape
    dim = orig_shape[-1]
    rows = math.prod(orig_shape[:-1]) if len(orig_shape) > 1 else 1
    itemsize = jnp.dtype(x.dtype).itemsize
    sublane = _sublane_multiple(x.dtype)

    # Lane-densification for small dim: fold k rows into the 128-lane axis.
    fold = 1
    if dim < _LANES and _LANES % dim == 0 and rows % (_LANES // dim) == 0:
        fold = _LANES // dim
    rows_eff = rows // fold
    dim_eff = dim * fold

    x2d = x.reshape(rows_eff, dim_eff)
    scale_f32 = scale.astype(jnp.float32).reshape(-1)
    if fold > 1:
        scale2d = jnp.tile(scale_f32, fold).reshape(1, dim_eff)
        gid = jnp.arange(dim_eff) // dim
        seg = (gid[:, None] == gid[None, :]).astype(jnp.float32)
    else:
        scale2d = scale_f32.reshape(1, dim_eff)
        seg = None

    if block_rows is None:
        block_rows = _pick_block_rows(rows_eff, dim_eff, x.dtype)
    block_rows = min(int(block_rows), rows_eff)
    # Block row-dim must be 8-aligned unless full extent; use the dtype-correct
    # sublane multiple (16 bf16 / 32 int8) so packed tiles stay unmasked.
    if block_rows != rows_eff:
        block_rows = max(sublane, (block_rows // sublane) * sublane)

    grid = (pl.cdiv(rows_eff, block_rows),)  # partial last tile handled by Pallas

    # VMEM budget: in+out tiles double-buffered plus ~4 full-tile f32
    # intermediates (x.astype(f32), x*x, products) plus headroom; capped
    # safely below v7x's 64 MiB physical VMEM.
    in_tile = block_rows * dim_eff * itemsize
    f32_tile = block_rows * dim_eff * 4
    vmem_limit = int(min(60 * 1024 * 1024,
                         4 * in_tile + 4 * f32_tile + (4 << 20)))
    # TODO(synk): no dim-tiling fallback for extreme dim (>~200K) where even a
    # sublane-high tile would exceed the VMEM cap; would need a two-pass /
    # second grid axis over dim with a (block_rows,1) f32 accumulator.

    cost = pl.CostEstimate(
        flops=int(5 * rows * dim),
        transcendentals=int(rows),
        bytes_accessed=int(2 * rows * dim * itemsize + dim * 4),
    )

    x_spec = pl.BlockSpec((block_rows, dim_eff), lambda i: (i, 0))
    s_spec = pl.BlockSpec((1, dim_eff), lambda i: (0, 0))
    o_spec = pl.BlockSpec((block_rows, dim_eff), lambda i: (i, 0))

    if fold > 1:
        kernel = functools.partial(_rmsnorm_folded_kernel,
                                   eps=float(eps), inv_dim=1.0 / float(dim))
        in_specs = [x_spec, s_spec,
                    pl.BlockSpec((dim_eff, dim_eff), lambda i: (0, 0))]
        args = (x2d, scale2d, seg)
    else:
        kernel = functools.partial(_rmsnorm_kernel,
                                   eps=float(eps), inv_dim=1.0 / float(dim))
        in_specs = [x_spec, s_spec]
        args = (x2d, scale2d)

    out = pl.pallas_call(
        kernel,
        out_shape=jax.ShapeDtypeStruct((rows_eff, dim_eff), x.dtype),
        grid_spec=pltpu.PrefetchScalarGridSpec(
            num_scalar_prefetch=0,
            grid=grid,
            in_specs=in_specs,
            out_specs=o_spec,
        ),
        compiler_params=pltpu.CompilerParams(
            dimension_semantics=("parallel",),
            vmem_limit_bytes=vmem_limit,
        ),
        cost_estimate=cost,
    )(*args)
    return out.reshape(orig_shape)


if __name__ == "__main__":
    def ref_rmsnorm(x, scale, eps=1e-6):
        xf = x.astype(jnp.float32)
        inv = jax.lax.rsqrt(jnp.mean(xf * xf, axis=-1, keepdims=True) + eps)
        return (scale.astype(jnp.float32) * xf * inv).astype(x.dtype)

    k1, k2, k3 = jax.random.split(jax.random.PRNGKey(0), 3)

    # Module-consistent small shape [batch, seq, dim]; dim=32 exercises the
    # lane-folded (dim < 128) path.  scale=ones matches nn.Parameter(torch.ones(dim)).
    x = jax.random.normal(k1, (2, 8, 32), dtype=jnp.float32)
    scale = jnp.ones((32,), dtype=jnp.float32)
    y = rmsnorm(x, scale)
    jax.block_until_ready(y)
    assert jnp.allclose(y, ref_rmsnorm(x, scale), atol=1e-5, rtol=1e-5), \
        "mismatch vs reference (lane-folded small-dim case)"

    # Standard path + non-divisible rows (rows=21, block_rows=8 -> partial tile)
    # with a non-trivial scale.
    x2 = jax.random.normal(k2, (3, 7, 256), dtype=jnp.float32)
    scale2 = jax.random.normal(k3, (256,), dtype=jnp.float32) * 0.1 + 1.0
    y2 = rmsnorm(x2, scale2, block_rows=8)
    jax.block_until_ready(y2)
    assert jnp.allclose(y2, ref_rmsnorm(x2, scale2), atol=1e-5, rtol=1e-5), \
        "mismatch vs reference (partial-tile case)"

    # bf16 path (dtype-correct sublane multiple of 16).
    x3 = jax.random.normal(k2, (4, 16, 256), dtype=jnp.bfloat16)
    scale3 = jnp.ones((256,), dtype=jnp.bfloat16)
    y3 = rmsnorm(x3, scale3)
    jax.block_until_ready(y3)
    assert jnp.allclose(y3.astype(jnp.float32),
                        ref_rmsnorm(x3, scale3).astype(jnp.float32),
                        atol=2e-2, rtol=2e-2), \
        "mismatch vs reference (bf16 case)"

    print("KERNEL_OK")
</pallas_src>

<mosaic_0001>
module attributes {stable_mosaic.version = 11 : i64} {
  func.func @_rmsnorm_folded_kernel(%arg0: i32, %arg1: memref<4x128xf32, #tpu.memory_space<vmem>>, %arg2: memref<1x128xf32, #tpu.memory_space<vmem>>, %arg3: memref<128x128xf32, #tpu.memory_space<vmem>>, %arg4: memref<4x128xf32, #tpu.memory_space<vmem>>) attributes {dimension_semantics = [#tpu.dimension_semantics<parallel>], iteration_bounds = array<i64: 1>, scalar_prefetch = 0 : i64, scratch_operands = 0 : i64, tpu.core_type = #tpu.core_type<tc>, window_params = [{transform_indices = @transform_0, window_bounds = array<i64: 4, 128>}, {pipeline_mode = #tpu.pipeline_mode<synchronous>, transform_indices = @transform_1, window_bounds = array<i64: 1, 128>}, {pipeline_mode = #tpu.pipeline_mode<synchronous>, transform_indices = @transform_2, window_bounds = array<i64: 128, 128>}, {transform_indices = @transform_3, window_bounds = array<i64: 4, 128>}]} {
    %c0 = arith.constant 0 : index
    %c0_0 = arith.constant 0 : index
    %0 = vector.load %arg1[%c0, %c0_0] : memref<4x128xf32, #tpu.memory_space<vmem>>, vector<4x128xf32>
    %1 = arith.mulf %0, %0 : vector<4x128xf32>
    %c0_1 = arith.constant 0 : index
    %c0_2 = arith.constant 0 : index
    %2 = vector.load %arg3[%c0_1, %c0_2] : memref<128x128xf32, #tpu.memory_space<vmem>>, vector<128x128xf32>
    %cst = arith.constant dense<0.000000e+00> : vector<4x128xf32>
    %3 = tpu.matmul %1, %2, %cst {dimension_numbers = #tpu.dot_dimension_numbers<[1], [0], [0], [1], [0, 0, 1, 1], [], []>} : vector<4x128xf32>, vector<128x128xf32>, vector<4x128xf32> -> vector<4x128xf32>
    %cst_3 = arith.constant 3.125000e-02 : f32
    %4 = vector.broadcast %cst_3 : f32 to vector<4x128xf32>
    %5 = arith.mulf %3, %4 : vector<4x128xf32>
    %cst_4 = arith.constant 9.99999997E-7 : f32
    %6 = vector.broadcast %cst_4 : f32 to vector<4x128xf32>
    %7 = arith.addf %5, %6 : vector<4x128xf32>
    %8 = math.rsqrt %7 : vector<4x128xf32>
    %9 = arith.mulf %0, %8 : vector<4x128xf32>
    %c0_5 = arith.constant 0 : index
    %c0_6 = arith.constant 0 : index
    %10 = vector.load %arg2[%c0_5, %c0_6] : memref<1x128xf32, #tpu.memory_space<vmem>>, vector<1x128xf32>
    %11 = vector.broadcast %10 : vector<1x128xf32> to vector<4x128xf32>
    %12 = arith.mulf %9, %11 : vector<4x128xf32>
    %c0_7 = arith.constant 0 : index
    %c0_8 = arith.constant 0 : index
    %13 = vector.load %arg4[%c0_7, %c0_8] : memref<4x128xf32, #tpu.memory_space<vmem>>, vector<4x128xf32>
    tpu.vector_store %arg4[%c0_7, %c0_8], %12 {strides = array<i32>} : memref<4x128xf32, #tpu.memory_space<vmem>>, vector<4x128xf32>,
    return
  }
  func.func @transform_0(%arg0: i32) -> (i32, i32) {
    %c0_i32 = arith.constant 0 : i32
    %c0_i32_0 = arith.constant 0 : i32
    return %arg0, %c0_i32 : i32, i32
  }
  func.func @transform_1(%arg0: i32) -> (i32, i32) {
    %c0_i32 = arith.constant 0 : i32
    %c0_i32_0 = arith.constant 0 : i32
    %c0_i32_1 = arith.constant 0 : i32
    return %c0_i32, %c0_i32_0 : i32, i32
  }
  func.func @transform_2(%arg0: i32) -> (i32, i32) {
    %c0_i32 = arith.constant 0 : i32
    %c0_i32_0 = arith.constant 0 : i32
    %c0_i32_1 = arith.constant 0 : i32
    return %c0_i32, %c0_i32_0 : i32, i32
  }
  func.func @transform_3(%arg0: i32) -> (i32, i32) {
    %c0_i32 = arith.constant 0 : i32
    %c0_i32_0 = arith.constant 0 : i32
    return %arg0, %c0_i32 : i32, i32
  }
}

</mosaic_0001>

<llo_original>
// kernel: tpu_custom_call.1
$region0: #{tpu_custom_call.1}
  #allocation0 [shape = 'u32[]', space=smem, size = 0x4, offset = 0x4, fixed_abs, tag = 'smem constant byte address 0x4 - core index']
  #allocation1 [shape = 'u32[72,128]{1,0:T(1,128)}', space=vmem, size = 0x9000, scoped, tag = 'internal scratch']
  %s0 = inlined_call_operand.hbm [shape: f32[4,128], index: 0, kind: input, shape index: {}]
  %s1 = inlined_call_operand.hbm [shape: f32[1,128], index: 1, kind: input, shape index: {}]
  %s2 = inlined_call_operand.hbm [shape: f32[128,128], index: 2, kind: input, shape index: {}]
  %s3 = inlined_call_operand.hbm [shape: f32[4,128], index: 3, kind: output, shape index: {}]
  %s4 = sld [smem:[#allocation0]]
  $region34: #{tpu_custom_call.1} parent=0
    _
  %s6 = ssub.s32 1, %s4
  %s7 = scalar_select 0, %s6, %s4
  $region1: #{tpu_custom_call.1} parent=0
    #allocation2 [shape = 'u8[2048]{0}', space=vmem, size = 0x800, scoped, tag = 'input window, operand 0, single buffered']
    #allocation3 [shape = 's32[1]{0}', space=sflag, size = 0x4, scoped, tag = 'scoped memory for tpu_custom_call.1']
    #allocation4 [shape = 's32[1]{0}', space=sflag, size = 0x4, scoped, tag = 'scoped memory for tpu_custom_call.1']
    #allocation5 [shape = 'u8[512]{0}', space=vmem, size = 0x400, scoped, tag = 'input window, operand 1, single buffered']
    #allocation6 [shape = 's32[1]{0}', space=sflag, size = 0x4, scoped, tag = 'scoped memory for tpu_custom_call.1']
    #allocation7 [shape = 'u8[65536]{0}', space=vmem, size = 0x10000, scoped, tag = 'input window, operand 2, single buffered']
    #allocation8 [shape = 'u8[2048]{0}', space=vmem, size = 0x800, scoped, tag = 'output window, operand 0, single buffered']
    %8 = vsyncpa [#allocation3], 0
    %9 = vsyncpa [#allocation6], 0
    %10 = vsyncpa [#allocation4], 0
    // Predicated region
    $region2: #{tpu_custom_call.1} parent=1 // pred_check
      _
    $region3: #{tpu_custom_call.1} parent=1 // pred_check_branch
      %12 = sbr.rel (0) target = $region5
    $region4: #{tpu_custom_call.1} parent=1 // pred_region
      %14 = vsyncadd [#allocation3], 0
      %s16 = sshll.u32 %s0, 4
      %s17 = int_to_ptr.hbm [resolvable:$true] %s16
      %s18 = sshll.u32 [#allocation2], 4
      %s19 = int_to_ptr.vmem [resolvable:$true] %s18
      %21 = dma.hbm_to_vmem [thread:$0]  %s17, 64, %s19, [#allocation3]
    $region5: #{tpu_custom_call.1} parent=1 // pred_fallthru
      _
    // Predicated region
    $region6: #{tpu_custom_call.1} parent=1 // pred_check
      _
    $region7: #{tpu_custom_call.1} parent=1 // pred_check_branch
      %23 = sbr.rel (0) target = $region9
    $region8: #{tpu_custom_call.1} parent=1 // pred_region
      %25 = vsyncadd [#allocation6], 0
      %s27 = sshll.u32 %s1, 4
      %s28 = int_to_ptr.hbm [resolvable:$true] %s27
      %s29 = sshll.u32 [#allocation5], 4
      %s30 = int_to_ptr.vmem [resolvable:$true] %s29
      %32 = dma.hbm_to_vmem [thread:$0]  %s28, 16, %s30, [#allocation6]
    $region9: #{tpu_custom_call.1} parent=1 // pred_fallthru
      _
    // Predicated region
    $region10: #{tpu_custom_call.1} parent=1 // pred_check
      _
    $region11: #{tpu_custom_call.1} parent=1 // pred_check_branch
      %34 = sbr.rel (0) target = $region13
    $region12: #{tpu_custom_call.1} parent=1 // pred_region
      %36 = vsyncadd [#allocation6], 0
      %s37 = sshll.u32 %s2, 4
      %s38 = int_to_ptr.hbm [resolvable:$true] %s37
      %s39 = sshll.u32 [#allocation7], 4
      %s40 = int_to_ptr.vmem [resolvable:$true] %s39
      %45 = dma.hbm_to_vmem [thread:$0]  %s38, 2048, %s40, [#allocation6], 128, 128, 8
    $region13: #{tpu_custom_call.1} parent=1 // pred_fallthru
      _
    // Predicated region
    $region14: #{tpu_custom_call.1} parent=1 // pred_check
      _
    $region15: #{tpu_custom_call.1} parent=1 // pred_check_branch
      %47 = sbr.rel (0) target = $region17
    $region16: #{tpu_custom_call.1} parent=1 // pred_region
      %49 = dma.done [#allocation3], 64
    $region17: #{tpu_custom_call.1} parent=1 // pred_fallthru
      _
    // Predicated region
    $region18: #{tpu_custom_call.1} parent=1 // pred_check
      _
    $region19: #{tpu_custom_call.1} parent=1 // pred_check_branch
      %51 = sbr.rel (0) target = $region21
    $region20: #{tpu_custom_call.1} parent=1 // pred_region
      %53 = dma.done [#allocation6], 16
    $region21: #{tpu_custom_call.1} parent=1 // pred_fallthru
      _
    // Predicated region
    $region22: #{tpu_custom_call.1} parent=1 // pred_check
      _
    $region23: #{tpu_custom_call.1} parent=1 // pred_check_branch
      %55 = sbr.rel (0) target = $region25
    $region24: #{tpu_custom_call.1} parent=1 // pred_region
      %57 = dma.done [#allocation6], 2048
    $region25: #{tpu_custom_call.1} parent=1 // pred_fallthru
      _
    %v58 = vld [vmem:[#allocation2] sm:$0xf]
    %v59 = vmul.f32 %v58, %v58
    %v60 = vld [vmem:[#allocation7] sm:$0xff]
    %v61 = vld [vmem:[#allocation7 + $0x8] sm:$0xff]
    %v62 = vld [vmem:[#allocation7 + $0x10] sm:$0xff]
    %v63 = vld [vmem:[#allocation7 + $0x18] sm:$0xff]
    %v64 = vld [vmem:[#allocation7 + $0x20] sm:$0xff]
    %v65 = vld [vmem:[#allocation7 + $0x28] sm:$0xff]
    %v66 = vld [vmem:[#allocation7 + $0x30] sm:$0xff]
    %v67 = vld [vmem:[#allocation7 + $0x38] sm:$0xff]
    %v68 = vld [vmem:[#allocation7 + $0x40] sm:$0xff]
    %v69 = vld [vmem:[#allocation7 + $0x48] sm:$0xff]
    %v70 = vld [vmem:[#allocation7 + $0x50] sm:$0xff]
    %v71 = vld [vmem:[#allocation7 + $0x58] sm:$0xff]
    %v72 = vld [vmem:[#allocation7 + $0x60] sm:$0xff]
    %v73 = vld [vmem:[#allocation7 + $0x68] sm:$0xff]
    %v74 = vld [vmem:[#allocation7 + $0x70] sm:$0xff]
    %v75 = vld [vmem:[#allocation7 + $0x78] sm:$0xff]
    %76 = vmatpush.msra.mxu0 %v75
    %77 = vmatpush.msra.mxu0 %v74
    %78 = vmatpush.msra.mxu0 %v73
    %79 = vmatpush.msra.mxu0 %v72
    %80 = vmatpush.msra.mxu0 %v71
    %81 = vmatpush.msra.mxu0 %v70
    %82 = vmatpush.msra.mxu0 %v69
    %83 = vmatpush.msra.mxu0 %v68
    %84 = vmatpush.msra.mxu0 %v67
    %85 = vmatpush.msra.mxu0 %v66
    %86 = vmatpush.msra.mxu0 %v65
    %87 = vmatpush.msra.mxu0 %v64
    %88 = vmatpush.msra.mxu0 %v63
    %89 = vmatpush.msra.mxu0 %v62
    %90 = vmatpush.msra.mxu0 %v61
    %91 = vmatpush.msra.mxu0 %v60
    %92 = vmatmul.f32.gmra.mxu0 %v59
    %v93 = vpop.f32.mrf.mxu0
    %v94 = vadd.f32 0.0, %v93
    %95 = vdwg.mxu0
    %v96 = vmul.f32 %v94, 0.03125
    %v97 = vadd.f32 %v96, 1e-06
    %v98 = vrsqrt.pop %v97
    %v99 = vmul.f32 %v98, %v97
    %v100 = vmul.f32 %v99, %v98
    %v101 = vmul.f32 0.5, %v100
    %v102 = vsub.f32 1.5, %v101
    %v103 = vmul.f32 %v98, %v102
    %vm104 = vweird.f32 %v97
    %vm105 = vweird.f32 %v98
    %vm106 = vmor %vm104, %vm105
    %v107 = vsel %vm106, %v98, %v103
    %v108 = vmul.f32 %v58, %v107
    %v109 = vld [vmem:[#allocation5] sm:$0x1]
    %v111 = vperm.slane %v109, 0
    %v113 = vmul.f32 %v108, %v111
    %114 = vst [vmem:[#allocation8] sm:$0xf] %v113
    // Predicated region
    $region26: #{tpu_custom_call.1} parent=1 // pred_check
      _
    $region27: #{tpu_custom_call.1} parent=1 // pred_check_branch
      %116 = sbr.rel (0) target = $region29
    $region28: #{tpu_custom_call.1} parent=1 // pred_region
      %118 = vsyncadd [#allocation4], 0
      %s120 = sshll.u32 [#allocation8], 4
      %s121 = int_to_ptr.vmem [resolvable:$true] %s120
      %s122 = sshll.u32 %s3, 4
      %s123 = int_to_ptr.hbm [resolvable:$true] %s122
      %125 = dma.vmem_to_hbm [thread:$0]  %s121, 64, %s123, [#allocation4]
    $region29: #{tpu_custom_call.1} parent=1 // pred_fallthru
      _
    // Predicated region
    $region30: #{tpu_custom_call.1} parent=1 // pred_check
      _
    $region31: #{tpu_custom_call.1} parent=1 // pred_check_branch
      %127 = sbr.rel (0) target = $region33
    $region32: #{tpu_custom_call.1} parent=1 // pred_region
      %129 = dma.done [#allocation4], 64
    $region33: #{tpu_custom_call.1} parent=1 // pred_fallthru
      _
    %130 = vsyncpa [#allocation3], 1
    %131 = vsyncpa [#allocation6], 1
    %132 = vsyncpa [#allocation4], 1

</llo_original>
